<compile_context>
chip_gen: v7x
topology: tpu7x:2x2x1
jax: 0.10.0
libtpu: 0.0.40
codegen_flags: <defaults>
</compile_context>

<pallas_src>
import math
import functools

import jax
import jax.numpy as jnp
from jax import lax
from jax.experimental import pallas as pl
from jax.experimental.pallas import tpu as pltpu

VMEM_SPEC = pl.BlockSpec(memory_space=pltpu.MemorySpace.VMEM)


# ------------------------------ fused Pallas kernel ------------------------------ #

def mhsaf_fused_kernel(x_ref, w_all_ref, wd_ref, wc_ref, vec_ref, out_ref,
                       *, n_pairs, cout, eps):
    f32 = jnp.float32
    N = n_pairs
    H = 2 * N                                                          # hidden size

    x = x_ref[...]                                                     # (1, H)  (input == hidden)

    # Packed constants: [b_all(3H) | b_dense(H) | conv_colsum(Cout) | conv_bias_fold(Cout)]
    vec = vec_ref[...]
    b_all = vec[:, 0:3 * H]                                            # (1, 3H)
    bd    = vec[:, 3 * H:4 * H]                                        # (1, H)
    cs    = vec[:, 4 * H:4 * H + cout]                                 # (1, Cout)
    cb    = vec[:, 4 * H + cout:4 * H + 2 * cout]                      # (1, Cout)

    # ---- 1) fused Q/K/V projection: one MXU pass, columns [qe|qo|ke|ko|ve|vo] ----
    # (Q columns pre-scaled by 1/sqrt(head_size) at init.)
    proj = jnp.dot(x, w_all_ref[...], preferred_element_type=f32) + b_all   # (1, 6N)
    q_row = proj[:, 0:H]                                               # (1, 2N)
    ke = proj[:, H + 0 * N:H + 1 * N]                                  # (1, N)
    ko = proj[:, H + 1 * N:H + 2 * N]
    ve = proj[:, H + 2 * N:H + 3 * N]
    vo = proj[:, H + 3 * N:H + 4 * N]

    # ---- 2) lane->sublane reorientation of q (VPU diagonal mask + lane reduction) ----
    rid = lax.broadcasted_iota(jnp.int32, (H, H), 0)
    cid = lax.broadcasted_iota(jnp.int32, (H, H), 1)
    q_col = jnp.sum(jnp.where(rid == cid, q_row, 0.0),
                    axis=1, keepdims=True)                             # (2N, 1), q_col[i]=q_row[0,i]
    qe = q_col[0:N, :]                                                 # (N, 1)
    qo = q_col[N:H, :]                                                 # (N, 1)

    # ---- 3) pair-wise attention scores: two VPU broadcast outer products ----
    scores = qe * ke + qo * ko                                         # (N, N)
    m = jnp.max(scores, axis=-1, keepdims=True)
    p = jnp.exp(scores - m)
    denom = jnp.sum(p, axis=-1, keepdims=True)
    probs = p * pl.reciprocal(denom, approx=False)                     # exact; attn_dropout = id

    # ---- 4) context halves, contracting the key (lane) axis directly (A @ B^T pattern) ----
    dn = (((1,), (1,)), ((), ()))
    ctx_e = lax.dot_general(ve, probs, dn, preferred_element_type=f32)  # (1, N)
    ctx_o = lax.dot_general(vo, probs, dn, preferred_element_type=f32)  # (1, N)
    ctx = jnp.concatenate([ctx_e, ctx_o], axis=1)                       # (1, 2N) lane concat

    # ---- 5) merged dense (stacked even/odd rows of W_d^T) + residual; out_dropout = id ----
    h = jnp.dot(ctx, wd_ref[...], preferred_element_type=f32) + bd + x  # (1, H)

    # ---- 6) LayerNorm statistics (affine folded into conv weights at init) ----
    u = jnp.mean(h, axis=-1, keepdims=True)                             # (1, 1)
    d = h - u
    s = jnp.mean(d * d, axis=-1, keepdims=True)
    rs = lax.rsqrt(s + eps)                                             # (1, 1)

    # ---- 7) conv3x3 centre tap with LN affine folded in:  rs*(h@wc' - u*cs) + cb ----
    hw = jnp.dot(h, wc_ref[...], preferred_element_type=f32)            # (1, Cout)
    out_ref[...] = rs * (hw - u * cs) + cb


# ----------------------------------- wrappers ------------------------------------ #

def init_params(key, num_heads, input_size, hidden_size, output_size):
    """PyTorch-layout parameters (Linear: (out,in) weight + bias; Conv2d: OIHW, bias=False)."""
    ks = jax.random.split(key, 5)

    def linear(k, fan_in, fan_out):
        bound = 1.0 / math.sqrt(fan_in)
        kw, kb = jax.random.split(k)
        w = jax.random.uniform(kw, (fan_out, fan_in), jnp.float32, -bound, bound)
        b = jax.random.uniform(kb, (fan_out,), jnp.float32, -bound, bound)
        return w, b

    Wq, bq = linear(ks[0], input_size, hidden_size)
    Wk, bk = linear(ks[1], input_size, hidden_size)
    Wv, bv = linear(ks[2], input_size, hidden_size)
    Wd, bd = linear(ks[3], hidden_size, hidden_size)
    cbound = 1.0 / math.sqrt(hidden_size * 9)
    conv_w = jax.random.uniform(ks[4], (output_size, hidden_size, 3, 3),
                                jnp.float32, -cbound, cbound)          # OIHW, bias=False
    return dict(Wq=Wq, bq=bq, Wk=Wk, bk=bk, Wv=Wv, bv=bv, Wd=Wd, bd=bd,
                ln_w=jnp.ones((hidden_size,), jnp.float32),
                ln_b=jnp.zeros((hidden_size,), jnp.float32),
                conv_w=conv_w)


def prepare_params(params, num_heads):
    """One-time re-pack of weights into kernel-ready layouts (no per-forward data movement)."""
    hidden = params["Wq"].shape[0]
    head_size = hidden // num_heads
    scale = 1.0 / math.sqrt(head_size)     # faithful to PyTorch: NOT 1/sqrt(2)

    Wq, bq = params["Wq"], params["bq"]
    Wk, bk = params["Wk"], params["bk"]
    Wv, bv = params["Wv"], params["bv"]
    Wd, bd = params["Wd"], params["bd"]
    ln_w, ln_b = params["ln_w"], params["ln_b"]

    WqT, WkT, WvT = Wq.T, Wk.T, Wv.T                                   # (D_in, H)

    # Single fused projection producing columns [qe|qo|ke|ko|ve|vo]; Q pre-scaled.
    w_all = jnp.concatenate(
        [WqT[:, 0::2] * scale, WqT[:, 1::2] * scale,
         WkT[:, 0::2], WkT[:, 1::2],
         WvT[:, 0::2], WvT[:, 1::2]], axis=1)                          # (D_in, 3H)
    b_all = jnp.concatenate(
        [bq[0::2] * scale, bq[1::2] * scale,
         bk[0::2], bk[1::2], bv[0::2], bv[1::2]])                      # (3H,)

    # Dense W_d^T with rows stacked [even ; odd] so the lane-concatenated context hits it
    # with a single matmul (absorbs the pair re-interleave).
    WdT = Wd.T
    wd_stack = jnp.concatenate([WdT[0::2, :], WdT[1::2, :]], axis=0)   # (H, H)

    # conv3x3 on 1x1 spatial input with padding=1: only the centre tap matters (exact).
    wc = params["conv_w"][:, :, 1, 1].T                                # (H, Cout)
    # Fold LayerNorm affine into the conv weights:  out = rs*(h@wc' - u*cs) + cb.
    wc_fold = ln_w[:, None] * wc                                       # (H, Cout)
    cs = jnp.sum(wc_fold, axis=0)                                      # (Cout,)
    cb = ln_b @ wc                                                     # (Cout,)

    vec_pack = jnp.concatenate([b_all, bd, cs, cb])[None, :]           # (1, 3H + H + 2*Cout)
    return dict(w_all=w_all, wd_stack=wd_stack, wc_fold=wc_fold, vec_pack=vec_pack)


@jax.jit
def mhsaf_forward(x, kp):
    hidden = kp["wd_stack"].shape[0]
    n_pairs = hidden // 2
    cout = kp["wc_fold"].shape[1]
    # Note: batch is fixed to 1 by the module semantics (view(all_head_size)), so no grid is
    # needed; a batched variant would add a leading "parallel" grid axis (2 TCs on v7x) with
    # constant-index weight BlockSpecs so weights stay resident in VMEM across grid steps.
    y = pl.pallas_call(
        functools.partial(mhsaf_fused_kernel, n_pairs=n_pairs, cout=cout, eps=1e-12),
        out_shape=jax.ShapeDtypeStruct((1, cout), jnp.float32),
        in_specs=[VMEM_SPEC] * 5,
        out_specs=VMEM_SPEC,
    )(x, kp["w_all"], kp["wd_stack"], kp["wc_fold"], kp["vec_pack"])
    return y.reshape(1, cout, 1, 1)        # NCHW like PyTorch: (1, output_size, 1, 1)


# Pure-JAX reference (mirrors the PyTorch forward, full 3x3 conv) for correctness checking.
def reference_forward(x, params, num_heads):
    hidden = params["Wq"].shape[0]
    head_size = hidden // num_heads
    q = x @ params["Wq"].T + params["bq"]
    k = x @ params["Wk"].T + params["bk"]
    v = x @ params["Wv"].T + params["bv"]
    q2, k2, v2 = (t.reshape(-1, 2) for t in (q, k, v))
    scores = (q2 @ k2.T) / math.sqrt(head_size)
    probs = jax.nn.softmax(scores, axis=-1)
    ctx = (probs @ v2).reshape(hidden)
    h = ctx @ params["Wd"].T + params["bd"]
    h = h + x
    u = h.mean(-1, keepdims=True)
    s = ((h - u) ** 2).mean(-1, keepdims=True)
    h = params["ln_w"] * ((h - u) / jnp.sqrt(s + 1e-12)) + params["ln_b"]
    x_nchw = h.reshape(1, hidden, 1, 1)
    return lax.conv_general_dilated(
        x_nchw, params["conv_w"], window_strides=(1, 1), padding=((1, 1), (1, 1)),
        dimension_numbers=("NCHW", "OIHW", "NCHW"))


if __name__ == "__main__":
    num_heads = 4
    input_size = 32          # must equal hidden_size for the residual add
    hidden_size = 32
    output_size = 8
    hidden_dropout_prob = 0.1  # unused (inference: dropout = identity)

    key = jax.random.PRNGKey(0)
    k_x, k_p, k_lw, k_lb = jax.random.split(key, 4)
    x = jax.random.normal(k_x, (1, input_size), jnp.float32)
    params = init_params(k_p, num_heads, input_size, hidden_size, output_size)
    # PyTorch default LN params are ones/zeros; randomize them here so the
    # LayerNorm-folded-into-conv path is actually exercised by the check.
    params["ln_w"] = 1.0 + 0.1 * jax.random.normal(k_lw, (hidden_size,), jnp.float32)
    params["ln_b"] = 0.1 * jax.random.normal(k_lb, (hidden_size,), jnp.float32)

    kparams = prepare_params(params, num_heads)

    out = jax.block_until_ready(mhsaf_forward(x, kparams))
    ref = jax.block_until_ready(reference_forward(x, params, num_heads))

    assert out.shape == (1, output_size, 1, 1), out.shape
    assert jnp.allclose(out, ref, rtol=1e-3, atol=1e-3), (out, ref)

    print("KERNEL_OK")
</pallas_src>

<mosaic_0001>
module attributes {stable_mosaic.version = 11 : i64} {
  func.func @mhsaf_fused_kernel(%arg0: memref<1x32xf32, #tpu.memory_space<vmem>>, %arg1: memref<32x96xf32, #tpu.memory_space<vmem>>, %arg2: memref<32x32xf32, #tpu.memory_space<vmem>>, %arg3: memref<32x8xf32, #tpu.memory_space<vmem>>, %arg4: memref<1x144xf32, #tpu.memory_space<vmem>>, %arg5: memref<1x8xf32, #tpu.memory_space<vmem>>) attributes {dimension_semantics = [], scalar_prefetch = 0 : i64, scratch_operands = 0 : i64, tpu.core_type = #tpu.core_type<tc>} {
    %c0 = arith.constant 0 : index
    %c0_0 = arith.constant 0 : index
    %0 = vector.load %arg0[%c0, %c0_0] : memref<1x32xf32, #tpu.memory_space<vmem>>, vector<1x32xf32>
    %c0_1 = arith.constant 0 : index
    %c0_2 = arith.constant 0 : index
    %1 = vector.load %arg4[%c0_1, %c0_2] : memref<1x144xf32, #tpu.memory_space<vmem>>, vector<1x144xf32>
    %2 = vector.extract_strided_slice %1 {offsets = [0, 0], sizes = [1, 96], strides = [1, 1]} : vector<1x144xf32> to vector<1x96xf32>
    %3 = vector.extract_strided_slice %1 {offsets = [0, 96], sizes = [1, 32], strides = [1, 1]} : vector<1x144xf32> to vector<1x32xf32>
    %4 = vector.extract_strided_slice %1 {offsets = [0, 128], sizes = [1, 8], strides = [1, 1]} : vector<1x144xf32> to vector<1x8xf32>
    %5 = vector.extract_strided_slice %1 {offsets = [0, 136], sizes = [1, 8], strides = [1, 1]} : vector<1x144xf32> to vector<1x8xf32>
    %c0_3 = arith.constant 0 : index
    %c0_4 = arith.constant 0 : index
    %6 = vector.load %arg1[%c0_3, %c0_4] : memref<32x96xf32, #tpu.memory_space<vmem>>, vector<32x96xf32>
    %cst = arith.constant dense<0.000000e+00> : vector<1x96xf32>
    %7 = tpu.matmul %0, %6, %cst {dimension_numbers = #tpu.dot_dimension_numbers<[1], [0], [0], [1], [0, 0, 1, 1], [], []>} : vector<1x32xf32>, vector<32x96xf32>, vector<1x96xf32> -> vector<1x96xf32>
    %8 = arith.addf %7, %2 : vector<1x96xf32>
    %9 = vector.extract_strided_slice %8 {offsets = [0, 0], sizes = [1, 32], strides = [1, 1]} : vector<1x96xf32> to vector<1x32xf32>
    %10 = vector.extract_strided_slice %8 {offsets = [0, 32], sizes = [1, 16], strides = [1, 1]} : vector<1x96xf32> to vector<1x16xf32>
    %11 = vector.extract_strided_slice %8 {offsets = [0, 48], sizes = [1, 16], strides = [1, 1]} : vector<1x96xf32> to vector<1x16xf32>
    %12 = vector.extract_strided_slice %8 {offsets = [0, 64], sizes = [1, 16], strides = [1, 1]} : vector<1x96xf32> to vector<1x16xf32>
    %13 = vector.extract_strided_slice %8 {offsets = [0, 80], sizes = [1, 16], strides = [1, 1]} : vector<1x96xf32> to vector<1x16xf32>
    %14 = tpu.iota {dimensions = array<i32: 0>} : vector<32x32xi32>
    %15 = tpu.iota {dimensions = array<i32: 1>} : vector<32x32xi32>
    %16 = arith.cmpi eq, %14, %15 : vector<32x32xi32>
    %cst_5 = arith.constant 0.000000e+00 : f32
    %17 = vector.shape_cast %9 : vector<1x32xf32> to vector<1x32xf32>
    %18 = vector.broadcast %17 : vector<1x32xf32> to vector<32x32xf32>
    %19 = vector.broadcast %cst_5 : f32 to vector<32x32xf32>
    %20 = arith.select %16, %18, %19 : vector<32x32xi1>, vector<32x32xf32>
    %cst_6 = arith.constant dense<0.000000e+00> : vector<32xf32>
    %21 = vector.multi_reduction <add>, %20, %cst_6 [1] : vector<32x32xf32> to vector<32xf32>
    %22 = vector.shape_cast %21 : vector<32xf32> to vector<32x1xf32>
    %23 = vector.extract_strided_slice %22 {offsets = [0, 0], sizes = [16, 1], strides = [1, 1]} : vector<32x1xf32> to vector<16x1xf32>
    %24 = vector.extract_strided_slice %22 {offsets = [16, 0], sizes = [16, 1], strides = [1, 1]} : vector<32x1xf32> to vector<16x1xf32>
    %25 = vector.broadcast %23 : vector<16x1xf32> to vector<16x16xf32>
    %26 = vector.broadcast %10 : vector<1x16xf32> to vector<16x16xf32>
    %27 = arith.mulf %25, %26 : vector<16x16xf32>
    %28 = vector.broadcast %24 : vector<16x1xf32> to vector<16x16xf32>
    %29 = vector.broadcast %11 : vector<1x16xf32> to vector<16x16xf32>
    %30 = arith.mulf %28, %29 : vector<16x16xf32>
    %31 = arith.addf %27, %30 : vector<16x16xf32>
    %cst_7 = arith.constant dense<0xFF800000> : vector<16xf32>
    %32 = vector.multi_reduction <maximumf>, %31, %cst_7 [1] : vector<16x16xf32> to vector<16xf32>
    %33 = vector.shape_cast %32 : vector<16xf32> to vector<16x1xf32>
    %34 = vector.broadcast %33 : vector<16x1xf32> to vector<16x16xf32>
    %35 = arith.subf %31, %34 : vector<16x16xf32>
    %36 = math.exp %35 : vector<16x16xf32>
    %cst_8 = arith.constant dense<0.000000e+00> : vector<16xf32>
    %37 = vector.multi_reduction <add>, %36, %cst_8 [1] : vector<16x16xf32> to vector<16xf32>
    %38 = vector.shape_cast %37 : vector<16xf32> to vector<16x1xf32>
    %39 = tpu.reciprocal %38 : vector<16x1xf32> -> vector<16x1xf32>
    %40 = vector.broadcast %39 : vector<16x1xf32> to vector<16x16xf32>
    %41 = arith.mulf %36, %40 : vector<16x16xf32>
    %cst_9 = arith.constant dense<0.000000e+00> : vector<1x16xf32>
    %42 = tpu.matmul %12, %41, %cst_9 {dimension_numbers = #tpu.dot_dimension_numbers<[1], [1], [0], [0], [0, 0, 1, 0], [], []>} : vector<1x16xf32>, vector<16x16xf32>, vector<1x16xf32> -> vector<1x16xf32>
    %cst_10 = arith.constant dense<0.000000e+00> : vector<1x16xf32>
    %43 = tpu.matmul %13, %41, %cst_10 {dimension_numbers = #tpu.dot_dimension_numbers<[1], [1], [0], [0], [0, 0, 1, 0], [], []>} : vector<1x16xf32>, vector<16x16xf32>, vector<1x16xf32> -> vector<1x16xf32>
    %44 = tpu.concatenate %42, %43 in 1 : vector<1x16xf32>, vector<1x16xf32> -> vector<1x32xf32>
    %c0_11 = arith.constant 0 : index
    %c0_12 = arith.constant 0 : index
    %45 = vector.load %arg2[%c0_11, %c0_12] : memref<32x32xf32, #tpu.memory_space<vmem>>, vector<32x32xf32>
    %cst_13 = arith.constant dense<0.000000e+00> : vector<1x32xf32>
    %46 = tpu.matmul %44, %45, %cst_13 {dimension_numbers = #tpu.dot_dimension_numbers<[1], [0], [0], [1], [0, 0, 1, 1], [], []>} : vector<1x32xf32>, vector<32x32xf32>, vector<1x32xf32> -> vector<1x32xf32>
    %47 = arith.addf %46, %3 : vector<1x32xf32>
    %48 = arith.addf %47, %0 : vector<1x32xf32>
    %cst_14 = arith.constant dense<0.000000e+00> : vector<1xf32>
    %49 = vector.multi_reduction <add>, %48, %cst_14 [1] : vector<1x32xf32> to vector<1xf32>
    %50 = vector.shape_cast %49 : vector<1xf32> to vector<1x1xf32>
    %cst_15 = arith.constant 3.200000e+01 : f32
    %51 = vector.broadcast %cst_15 : f32 to vector<1x1xf32>
    %52 = arith.divf %50, %51 : vector<1x1xf32>
    %53 = vector.broadcast %52 : vector<1x1xf32> to vector<1x32xf32>
    %54 = arith.subf %48, %53 : vector<1x32xf32>
    %55 = arith.mulf %54, %54 : vector<1x32xf32>
    %cst_16 = arith.constant dense<0.000000e+00> : vector<1xf32>
    %56 = vector.multi_reduction <add>, %55, %cst_16 [1] : vector<1x32xf32> to vector<1xf32>
    %57 = vector.shape_cast %56 : vector<1xf32> to vector<1x1xf32>
    %cst_17 = arith.constant 3.200000e+01 : f32
    %58 = vector.broadcast %cst_17 : f32 to vector<1x1xf32>
    %59 = arith.divf %57, %58 : vector<1x1xf32>
    %cst_18 = arith.constant 9.99999996E-13 : f32
    %60 = vector.broadcast %cst_18 : f32 to vector<1x1xf32>
    %61 = arith.addf %59, %60 : vector<1x1xf32>
    %62 = math.rsqrt %61 : vector<1x1xf32>
    %c0_19 = arith.constant 0 : index
    %c0_20 = arith.constant 0 : index
    %63 = vector.load %arg3[%c0_19, %c0_20] : memref<32x8xf32, #tpu.memory_space<vmem>>, vector<32x8xf32>
    %cst_21 = arith.constant dense<0.000000e+00> : vector<1x8xf32>
    %64 = tpu.matmul %48, %63, %cst_21 {dimension_numbers = #tpu.dot_dimension_numbers<[1], [0], [0], [1], [0, 0, 1, 1], [], []>} : vector<1x32xf32>, vector<32x8xf32>, vector<1x8xf32> -> vector<1x8xf32>
    %65 = vector.broadcast %52 : vector<1x1xf32> to vector<1x8xf32>
    %66 = arith.mulf %65, %4 : vector<1x8xf32>
    %67 = arith.subf %64, %66 : vector<1x8xf32>
    %68 = vector.broadcast %62 : vector<1x1xf32> to vector<1x8xf32>
    %69 = arith.mulf %68, %67 : vector<1x8xf32>
    %70 = arith.addf %69, %5 : vector<1x8xf32>
    %c0_22 = arith.constant 0 : index
    %c0_23 = arith.constant 0 : index
    %71 = vector.load %arg5[%c0_22, %c0_23] : memref<1x8xf32, #tpu.memory_space<vmem>>, vector<1x8xf32>
    tpu.vector_store %arg5[%c0_22, %c0_23], %70 {strides = array<i32>} : memref<1x8xf32, #tpu.memory_space<vmem>>, vector<1x8xf32>,
    return
  }
}

</mosaic_0001>

<llo_original>
// kernel: mhsaf_forward.1
$region0: #{mhsaf_forward.1}
  #allocation0 [shape = 'u32[]', space=smem, size = 0x4, offset = 0x4, fixed_abs, tag = 'smem constant byte address 0x4 - core index']
  #allocation1 [shape = 'u32[144,128]{1,0:T(1,128)}', space=vmem, size = 0x12000, scoped, tag = 'internal scratch']
  %s0 = inlined_call_operand.vmem [shape: f32[1,32], index: 0, kind: input, shape index: {}]
  %s1 = inlined_call_operand.vmem [shape: f32[32,96], index: 1, kind: input, shape index: {}]
  %s2 = inlined_call_operand.hbm [shape: f32[32,32], index: 2, kind: input, shape index: {}]
  %s3 = inlined_call_operand.vmem [shape: f32[32,8], index: 3, kind: input, shape index: {}]
  %s4 = inlined_call_operand.vmem [shape: f32[1,144], index: 4, kind: input, shape index: {}]
  %s5 = inlined_call_operand.hbm [shape: f32[1,8], index: 5, kind: output, shape index: {}]
  %s6 = sld [smem:[#allocation0]]
  $region34: #{mhsaf_forward.1} parent=0
    _
  %s8 = ssub.s32 1, %s6
  %s9 = scalar_select 0, %s8, %s6
  $region1: #{mhsaf_forward.1} parent=0
    #allocation2 [shape = 'u8[16384]{0}', space=vmem, size = 0x4000, scoped, tag = 'input window, operand 2, single buffered']
    #allocation3 [shape = 's32[1]{0}', space=sflag, size = 0x4, scoped, tag = 'scoped memory for mhsaf_forward.1']
    #allocation4 [shape = 's32[1]{0}', space=sflag, size = 0x4, scoped, tag = 'scoped memory for mhsaf_forward.1']
    #allocation5 [shape = 'u8[512]{0}', space=vmem, size = 0x400, scoped, tag = 'output window, operand 0, single buffered']
    %10 = vsyncpa [#allocation3], 0
    %11 = vsyncpa [#allocation4], 0
    // Predicated region
    $region2: #{mhsaf_forward.1} parent=1 // pred_check
      _
    $region3: #{mhsaf_forward.1} parent=1 // pred_check_branch
      %13 = sbr.rel (0) target = $region5
    $region4: #{mhsaf_forward.1} parent=1 // pred_region
      _
    $region5: #{mhsaf_forward.1} parent=1 // pred_fallthru
      _
    // Predicated region
    $region6: #{mhsaf_forward.1} parent=1 // pred_check
      _
    $region7: #{mhsaf_forward.1} parent=1 // pred_check_branch
      %15 = sbr.rel (0) target = $region9
    $region8: #{mhsaf_forward.1} parent=1 // pred_region
      _
    $region9: #{mhsaf_forward.1} parent=1 // pred_fallthru
      _
    // Predicated region
    $region10: #{mhsaf_forward.1} parent=1 // pred_check
      _
    $region11: #{mhsaf_forward.1} parent=1 // pred_check_branch
      %17 = sbr.rel (0) target = $region13
    $region12: #{mhsaf_forward.1} parent=1 // pred_region
      %s19 = ssub.s32 512, 512
      %20 = vsyncadd [#allocation3], %s19
      %s21 = sshll.u32 [#allocation2], 4
      %s22 = int_to_ptr.vmem [resolvable:$true] %s21
      %27 = dma.hbm_to_vmem [thread:$0]  %s2, 512, %s22, [#allocation3], 128, 128, 8
    $region13: #{mhsaf_forward.1} parent=1 // pred_fallthru
      _
    // Predicated region
    $region14: #{mhsaf_forward.1} parent=1 // pred_check
      _
    $region15: #{mhsaf_forward.1} parent=1 // pred_check_branch
      %29 = sbr.rel (0) target = $region17
    $region16: #{mhsaf_forward.1} parent=1 // pred_region
      _
    $region17: #{mhsaf_forward.1} parent=1 // pred_fallthru
      _
    // Predicated region
    $region18: #{mhsaf_forward.1} parent=1 // pred_check
      _
    $region19: #{mhsaf_forward.1} parent=1 // pred_check_branch
      %31 = sbr.rel (0) target = $region21
    $region20: #{mhsaf_forward.1} parent=1 // pred_region
      _
    $region21: #{mhsaf_forward.1} parent=1 // pred_fallthru
      _
    // Predicated region
    $region22: #{mhsaf_forward.1} parent=1 // pred_check
      _
    $region23: #{mhsaf_forward.1} parent=1 // pred_check_branch
      %33 = sbr.rel (0) target = $region25
    $region24: #{mhsaf_forward.1} parent=1 // pred_region
      %34 = dma.done [#allocation3], 512
    $region25: #{mhsaf_forward.1} parent=1 // pred_fallthru
      _
    %v35 = vld [vmem:[%s0] sm:$0x1]
    %v36 = vld [vmem:[%s4] sm:$0x3]
    %v37 = vld [vmem:[%s1] sm:$0xff]
    %v38 = vld [vmem:[%s1 + $0x8] sm:$0xff]
    %v39 = vld [vmem:[%s1 + $0x10] sm:$0xff]
    %v40 = vld [vmem:[%s1 + $0x18] sm:$0xff]
    %vm41 = vcmask 261120
    %v43 = vsel %vm41, %v35, 0
    %45 = vmatprep.subr.mxu0 0.0
    %46 = vmatpush1.msra.mxu0 %v37
    %47 = vmatprep.subr.mxu0 0.0
    %48 = vmatpush1.msra.mxu0 %v38
    %49 = vmatprep.subr.mxu0 0.0
    %50 = vmatpush1.msra.mxu0 %v39
    %51 = vmatprep.subr.mxu0 0.0
    %52 = vmatpush1.msra.mxu0 %v40
    %53 = vmatprep.subr.mxu0 0.0
    %54 = vmatpush1.msra.mxu0 0.0
    %55 = vmatprep.subr.mxu0 0.0
    %56 = vmatpush1.msra.mxu0 0.0
    %57 = vmatprep.subr.mxu0 0.0
    %58 = vmatpush1.msra.mxu0 0.0
    %59 = vmatprep.subr.mxu0 0.0
    %60 = vmatpush1.msra.mxu0 0.0
    %61 = vmatprep.subr.mxu0 0.0
    %62 = vmatpush1.msra.mxu0 0.0
    %63 = vmatprep.subr.mxu0 0.0
    %64 = vmatpush1.msra.mxu0 0.0
    %65 = vmatprep.subr.mxu0 0.0
    %66 = vmatpush1.msra.mxu0 0.0
    %67 = vmatprep.subr.mxu0 0.0
    %68 = vmatpush1.msra.mxu0 0.0
    %69 = vmatprep.subr.mxu0 0.0
    %70 = vmatpush1.msra.mxu0 0.0
    %71 = vmatprep.subr.mxu0 0.0
    %72 = vmatpush1.msra.mxu0 0.0
    %73 = vmatprep.subr.mxu0 0.0
    %74 = vmatpush1.msra.mxu0 0.0
    %75 = vmatprep.subr.mxu0 0.0
    %76 = vmatpush1.msra.mxu0 0.0
    %77 = vmatprep.subr.mxu0 0.0
    %78 = vmatpush1.msra.mxu0 0.0
    %79 = vmatprep.subr.mxu0 0.0
    %80 = vmatpush1.msra.mxu0 0.0
    %81 = vmatprep.subr.mxu0 0.0
    %82 = vmatpush1.msra.mxu0 0.0
    %83 = vmatprep.subr.mxu0 0.0
    %84 = vmatpush1.msra.mxu0 0.0
    %85 = vmatprep.subr.mxu0 0.0
    %86 = vmatpush1.msra.mxu0 0.0
    %87 = vmatprep.subr.mxu0 0.0
    %88 = vmatpush1.msra.mxu0 0.0
    %89 = vmatprep.subr.mxu0 0.0
    %90 = vmatpush1.msra.mxu0 0.0
    %91 = vmatprep.subr.mxu0 0.0
    %92 = vmatpush1.msra.mxu0 0.0
    %93 = vmatprep.subr.mxu0 0.0
    %94 = vmatpush1.msra.mxu0 0.0
    %95 = vmatprep.subr.mxu0 0.0
    %96 = vmatpush1.msra.mxu0 0.0
    %97 = vmatprep.subr.mxu0 0.0
    %98 = vmatpush1.msra.mxu0 0.0
    %99 = vmatprep.subr.mxu0 0.0
    %100 = vmatpush1.msra.mxu0 0.0
    %101 = vmatprep.subr.mxu0 0.0
    %102 = vmatpush1.msra.mxu0 0.0
    %103 = vmatprep.subr.mxu0 0.0
    %104 = vmatpush1.msra.mxu0 0.0
    %105 = vmatprep.subr.mxu0 0.0
    %106 = vmatpush1.msra.mxu0 0.0
    %107 = vmatprep.subr.mxu0 0.0
    %108 = vmatpush1.msra.mxu0 0.0
    %109 = vmatprep.mubr.f32.mxu0 0.0
    %110 = vmatmul.mubr.f32.gmra.mrb[0].mxu0 %v43
    %v111 = vpop.f32.mrb[0].mxu0
    %v112 = vadd.f32 %v36, %v111
    %v113 = vpop.f32.mrb[0].mxu0
    %114 = vdwg.mxu0
    %v115 = vlaneseq
    %v116 = vshrl.u32 %v115, 7
    %v117 = vadd.s32 %v116, 8
    %v118 = vadd.s32 %v116, 16
    %v119 = vadd.s32 %v116, 24
    %v120 = vlaneseq
    %v121 = vand.u32 %v120, 127
    %vm122 = vcmp.eq.s32.totalorder %v116, %v121
    %vm123 = vcmp.eq.s32.totalorder %v117, %v121
    %vm124 = vcmp.eq.s32.totalorder %v118, %v121
    %vm125 = vcmp.eq.s32.totalorder %v119, %v121
    %v126 = vlaneseq
    %v127 = vshrl.u32 %v126, 7
    %v128 = vsub.s32 0, %v127
    %v129 = vrot.slane %v112, %v128
    %v130 = vsel %vm122, %v129, 0.0
    %v131 = vsel %vm123, %v129, 0.0
    %v132 = vsel %vm124, %v129, 0.0
    %v133 = vsel %vm125, %v129, 0.0
    %v134 = vsel %vm41, %v130, 0.0
    %135 = vadd.xlane.f32.xlu0 %v134
    %v136 = vpop.xlane.xlu0 %135
    %v137 = vsel %vm41, %v131, 0.0
    %138 = vadd.xlane.f32.xlu0 %v137
    %v139 = vpop.xlane.xlu0 %138
    %v140 = vsel %vm41, %v132, 0.0
    %141 = vadd.xlane.f32.xlu0 %v140
    %v142 = vpop.xlane.xlu0 %141
    %v143 = vsel %vm41, %v133, 0.0
    %144 = vadd.xlane.f32.xlu0 %v143
    %v145 = vpop.xlane.xlu0 %144
    %v146 = vmul.f32 %v136, %v129
    %v147 = vmul.f32 %v139, %v129
    %v148 = vmul.f32 %v142, %v129
    %v149 = vmul.f32 %v145, %v129
    %152 = vrot.lane.b32.xlu0 %v148, 112
    %v153 = vpop.permute.xlu0 %152
    %154 = vrot.lane.b32.xlu0 %v149, 112
    %v155 = vpop.permute.xlu0 %154
    %v158 = vadd.f32 %v146, %v153
    %v159 = vadd.f32 %v147, %v155
    %vm160 = vcmask 392448
    %v161 = vsel %vm160, %v158, -inf
    %162 = vmax.xlane.f32.xlu0 %v161
    %v163 = vpop.xlane.xlu0 %162
    %v164 = vsel %vm160, %v159, -inf
    %165 = vmax.xlane.f32.xlu0 %v164
    %v166 = vpop.xlane.xlu0 %165
    %v167 = vsub.f32 %v158, %v163
    %v168 = vsub.f32 %v159, %v166
    %v169 = vmul.f32 %v167, 1.442695
    %v170 = vpow.pop %v169
    %v171 = vmul.f32 %v168, 1.442695
    %v172 = vpow.pop %v171
    %175 = vrot.lane.b32.xlu0 %v170, 96
    %v176 = vpop.permute.xlu0 %175
    %177 = vrot.lane.b32.xlu0 %v172, 96
    %v178 = vpop.permute.xlu0 %177
    %vm181 = vcmask 130048
    %v182 = vsel %vm181, %v176, 0.0
    %183 = vadd.xlane.f32.xlu0 %v182
    %v184 = vpop.xlane.xlu0 %183
    %v185 = vsel %vm181, %v178, 0.0
    %186 = vadd.xlane.f32.xlu0 %v185
    %v187 = vpop.xlane.xlu0 %186
    %v188 = vrcp.pop %v184
    %v189 = vrcp.pop %v187
    %v190 = vmul.f32 %v170, %v188
    %v191 = vmul.f32 %v172, %v189
    %193 = vrot.lane.b32.xlu0 %v112, 64
    %v194 = vpop.permute.xlu0 %193
    %197 = vrot.lane.b32.xlu0 %v190, 96
    %v198 = vpop.permute.xlu0 %197
    %199 = vrot.lane.b32.xlu0 %v191, 96
    %v200 = vpop.permute.xlu0 %199
    %v201 = vsel %vm181, %v194, 0
    %v203 = vsel %vm181, %v198, 0
    %v205 = vsel %vm181, %v200, 0
    %207 = vmatprep.subr.mxu0 0.0
    %208 = vmatpush1.xpose.msra.mxu0 %v203
    %209 = vmatprep.subr.mxu0 0.0
    %210 = vmatpush1.xpose.msra.mxu0 %v205
    %211 = vmatprep.subr.mxu0 0.0
    %212 = vmatpush1.xpose.msra.mxu0 0.0
    %213 = vmatprep.subr.mxu0 0.0
    %214 = vmatpush1.xpose.msra.mxu0 0.0
    %215 = vmatprep.subr.mxu0 0.0
    %216 = vmatpush1.xpose.msra.mxu0 0.0
    %217 = vmatprep.subr.mxu0 0.0
    %218 = vmatpush1.xpose.msra.mxu0 0.0
    %219 = vmatprep.subr.mxu0 0.0
    %220 = vmatpush1.xpose.msra.mxu0 0.0
    %221 = vmatprep.subr.mxu0 0.0
    %222 = vmatpush1.xpose.msra.mxu0 0.0
    %223 = vmatprep.subr.mxu0 0.0
    %224 = vmatpush1.xpose.msra.mxu0 0.0
    %225 = vmatprep.subr.mxu0 0.0
    %226 = vmatpush1.xpose.msra.mxu0 0.0
    %227 = vmatprep.subr.mxu0 0.0
    %228 = vmatpush1.xpose.msra.mxu0 0.0
    %229 = vmatprep.subr.mxu0 0.0
    %230 = vmatpush1.xpose.msra.mxu0 0.0
    %231 = vmatprep.subr.mxu0 0.0
    %232 = vmatpush1.xpose.msra.mxu0 0.0
    %233 = vmatprep.subr.mxu0 0.0
    %234 = vmatpush1.xpose.msra.mxu0 0.0
    %235 = vmatprep.subr.mxu0 0.0
    %236 = vmatpush1.xpose.msra.mxu0 0.0
    %237 = vmatprep.subr.mxu0 0.0
    %238 = vmatpush1.xpose.msra.mxu0 0.0
    %239 = vmatprep.subr.mxu0 0.0
    %240 = vmatpush1.xpose.msra.mxu0 0.0
    %241 = vmatprep.subr.mxu0 0.0
    %242 = vmatpush1.xpose.msra.mxu0 0.0
    %243 = vmatprep.subr.mxu0 0.0
    %244 = vmatpush1.xpose.msra.mxu0 0.0
    %245 = vmatprep.subr.mxu0 0.0
    %246 = vmatpush1.xpose.msra.mxu0 0.0
    %247 = vmatprep.subr.mxu0 0.0
    %248 = vmatpush1.xpose.msra.mxu0 0.0
    %249 = vmatprep.subr.mxu0 0.0
    %250 = vmatpush1.xpose.msra.mxu0 0.0
    %251 = vmatprep.subr.mxu0 0.0
    %252 = vmatpush1.xpose.msra.mxu0 0.0
    %253 = vmatprep.subr.mxu0 0.0
    %254 = vmatpush1.xpose.msra.mxu0 0.0
    %255 = vmatprep.subr.mxu0 0.0
    %256 = vmatpush1.xpose.msra.mxu0 0.0
    %257 = vmatprep.subr.mxu0 0.0
    %258 = vmatpush1.xpose.msra.mxu0 0.0
    %259 = vmatprep.subr.mxu0 0.0
    %260 = vmatpush1.xpose.msra.mxu0 0.0
    %261 = vmatprep.subr.mxu0 0.0
    %262 = vmatpush1.xpose.msra.mxu0 0.0
    %263 = vmatprep.subr.mxu0 0.0
    %264 = vmatpush1.xpose.msra.mxu0 0.0
    %265 = vmatprep.subr.mxu0 0.0
    %266 = vmatpush1.xpose.msra.mxu0 0.0
    %267 = vmatprep.subr.mxu0 0.0
    %268 = vmatpush1.xpose.msra.mxu0 0.0
    %269 = vmatprep.subr.mxu0 0.0
    %270 = vmatpush1.xpose.msra.mxu0 0.0
    %271 = vmatprep.mubr.f32.mxu0 0.0
    %272 = vmatmul.mubr.f32.gmra.mrb[0].mxu0 %v201
    %v273 = vpop.f32.mrb[0].mxu0
    %v274 = vadd.f32 0.0, %v273
    %v275 = vpop.f32.mrb[0].mxu0
    %276 = vdwg.mxu0
    %277 = vrot.lane.b32.xlu0 %v112, 48
    %v278 = vpop.permute.xlu0 %277
    %v279 = vsel %vm181, %v278, 0
    %281 = vmatprep.subr.mxu0 0.0
    %282 = vmatpush1.xpose.msra.mxu0 %v203
    %283 = vmatprep.subr.mxu0 0.0
    %284 = vmatpush1.xpose.msra.mxu0 %v205
    %285 = vmatprep.subr.mxu0 0.0
    %286 = vmatpush1.xpose.msra.mxu0 0.0
    %287 = vmatprep.subr.mxu0 0.0
    %288 = vmatpush1.xpose.msra.mxu0 0.0
    %289 = vmatprep.subr.mxu0 0.0
    %290 = vmatpush1.xpose.msra.mxu0 0.0
    %291 = vmatprep.subr.mxu0 0.0
    %292 = vmatpush1.xpose.msra.mxu0 0.0
    %293 = vmatprep.subr.mxu0 0.0
    %294 = vmatpush1.xpose.msra.mxu0 0.0
    %295 = vmatprep.subr.mxu0 0.0
    %296 = vmatpush1.xpose.msra.mxu0 0.0
    %297 = vmatprep.subr.mxu0 0.0
    %298 = vmatpush1.xpose.msra.mxu0 0.0
    %299 = vmatprep.subr.mxu0 0.0
    %300 = vmatpush1.xpose.msra.mxu0 0.0
    %301 = vmatprep.subr.mxu0 0.0
    %302 = vmatpush1.xpose.msra.mxu0 0.0
    %303 = vmatprep.subr.mxu0 0.0
    %304 = vmatpush1.xpose.msra.mxu0 0.0
    %305 = vmatprep.subr.mxu0 0.0
    %306 = vmatpush1.xpose.msra.mxu0 0.0
    %307 = vmatprep.subr.mxu0 0.0
    %308 = vmatpush1.xpose.msra.mxu0 0.0
    %309 = vmatprep.subr.mxu0 0.0
    %310 = vmatpush1.xpose.msra.mxu0 0.0
    %311 = vmatprep.subr.mxu0 0.0
    %312 = vmatpush1.xpose.msra.mxu0 0.0
    %313 = vmatprep.subr.mxu0 0.0
    %314 = vmatpush1.xpose.msra.mxu0 0.0
    %315 = vmatprep.subr.mxu0 0.0
    %316 = vmatpush1.xpose.msra.mxu0 0.0
    %317 = vmatprep.subr.mxu0 0.0
    %318 = vmatpush1.xpose.msra.mxu0 0.0
    %319 = vmatprep.subr.mxu0 0.0
    %320 = vmatpush1.xpose.msra.mxu0 0.0
    %321 = vmatprep.subr.mxu0 0.0
    %322 = vmatpush1.xpose.msra.mxu0 0.0
    %323 = vmatprep.subr.mxu0 0.0
    %324 = vmatpush1.xpose.msra.mxu0 0.0
    %325 = vmatprep.subr.mxu0 0.0
    %326 = vmatpush1.xpose.msra.mxu0 0.0
    %327 = vmatprep.subr.mxu0 0.0
    %328 = vmatpush1.xpose.msra.mxu0 0.0
    %329 = vmatprep.subr.mxu0 0.0
    %330 = vmatpush1.xpose.msra.mxu0 0.0
    %331 = vmatprep.subr.mxu0 0.0
    %332 = vmatpush1.xpose.msra.mxu0 0.0
    %333 = vmatprep.subr.mxu0 0.0
    %334 = vmatpush1.xpose.msra.mxu0 0.0
    %335 = vmatprep.subr.mxu0 0.0
    %336 = vmatpush1.xpose.msra.mxu0 0.0
    %337 = vmatprep.subr.mxu0 0.0
    %338 = vmatpush1.xpose.msra.mxu0 0.0
    %339 = vmatprep.subr.mxu0 0.0
    %340 = vmatpush1.xpose.msra.mxu0 0.0
    %341 = vmatprep.subr.mxu0 0.0
    %342 = vmatpush1.xpose.msra.mxu0 0.0
    %343 = vmatprep.subr.mxu0 0.0
    %344 = vmatpush1.xpose.msra.mxu0 0.0
    %345 = vmatprep.mubr.f32.mxu0 0.0
    %346 = vmatmul.mubr.f32.gmra.mrb[0].mxu0 %v279
    %v347 = vpop.f32.mrb[0].mxu0
    %v348 = vadd.f32 0.0, %v347
    %v349 = vpop.f32.mrb[0].mxu0
    %350 = vdwg.mxu0
    %352 = vrot.lane.b32.xlu0 %v348, 16
    %v353 = vpop.permute.xlu0 %352
    %v355 = vsel %vm181, %v274, %v353
    %v356 = vld [vmem:[#allocation2] sm:$0xff]
    %v357 = vld [vmem:[#allocation2 + $0x8] sm:$0xff]
    %v358 = vld [vmem:[#allocation2 + $0x10] sm:$0xff]
    %v359 = vld [vmem:[#allocation2 + $0x18] sm:$0xff]
    %v361 = vlaneseq
    %v362 = vshrl.u32 %v361, 7
    %v363 = vsub.s32 0, %v362
    %v364 = vrot.slane %v36, %v363
    %365 = vrot.lane.b32.xlu0 %v364, 32
    %v366 = vpop.permute.xlu0 %365
    %v369 = vsel %vm41, %v355, 0
    %371 = vmatprep.subr.mxu0 0.0
    %372 = vmatpush1.msra.mxu0 %v356
    %373 = vmatprep.subr.mxu0 0.0
    %374 = vmatpush1.msra.mxu0 %v357
    %375 = vmatprep.subr.mxu0 0.0
    %376 = vmatpush1.msra.mxu0 %v358
    %377 = vmatprep.subr.mxu0 0.0
    %378 = vmatpush1.msra.mxu0 %v359
    %379 = vmatprep.subr.mxu0 0.0
    %380 = vmatpush1.msra.mxu0 0.0
    %381 = vmatprep.subr.mxu0 0.0
    %382 = vmatpush1.msra.mxu0 0.0
    %383 = vmatprep.subr.mxu0 0.0
    %384 = vmatpush1.msra.mxu0 0.0
    %385 = vmatprep.subr.mxu0 0.0
    %386 = vmatpush1.msra.mxu0 0.0
    %387 = vmatprep.subr.mxu0 0.0
    %388 = vmatpush1.msra.mxu0 0.0
    %389 = vmatprep.subr.mxu0 0.0
    %390 = vmatpush1.msra.mxu0 0.0
    %391 = vmatprep.subr.mxu0 0.0
    %392 = vmatpush1.msra.mxu0 0.0
    %393 = vmatprep.subr.mxu0 0.0
    %394 = vmatpush1.msra.mxu0 0.0
    %395 = vmatprep.subr.mxu0 0.0
    %396 = vmatpush1.msra.mxu0 0.0
    %397 = vmatprep.subr.mxu0 0.0
    %398 = vmatpush1.msra.mxu0 0.0
    %399 = vmatprep.subr.mxu0 0.0
    %400 = vmatpush1.msra.mxu0 0.0
    %401 = vmatprep.subr.mxu0 0.0
    %402 = vmatpush1.msra.mxu0 0.0
    %403 = vmatprep.subr.mxu0 0.0
    %404 = vmatpush1.msra.mxu0 0.0
    %405 = vmatprep.subr.mxu0 0.0
    %406 = vmatpush1.msra.mxu0 0.0
    %407 = vmatprep.subr.mxu0 0.0
    %408 = vmatpush1.msra.mxu0 0.0
    %409 = vmatprep.subr.mxu0 0.0
    %410 = vmatpush1.msra.mxu0 0.0
    %411 = vmatprep.subr.mxu0 0.0
    %412 = vmatpush1.msra.mxu0 0.0
    %413 = vmatprep.subr.mxu0 0.0
    %414 = vmatpush1.msra.mxu0 0.0
    %415 = vmatprep.subr.mxu0 0.0
    %416 = vmatpush1.msra.mxu0 0.0
    %417 = vmatprep.subr.mxu0 0.0
    %418 = vmatpush1.msra.mxu0 0.0
    %419 = vmatprep.subr.mxu0 0.0
    %420 = vmatpush1.msra.mxu0 0.0
    %421 = vmatprep.subr.mxu0 0.0
    %422 = vmatpush1.msra.mxu0 0.0
    %423 = vmatprep.subr.mxu0 0.0
    %424 = vmatpush1.msra.mxu0 0.0
    %425 = vmatprep.subr.mxu0 0.0
    %426 = vmatpush1.msra.mxu0 0.0
    %427 = vmatprep.subr.mxu0 0.0
    %428 = vmatpush1.msra.mxu0 0.0
    %429 = vmatprep.subr.mxu0 0.0
    %430 = vmatpush1.msra.mxu0 0.0
    %431 = vmatprep.subr.mxu0 0.0
    %432 = vmatpush1.msra.mxu0 0.0
    %433 = vmatprep.subr.mxu0 0.0
    %434 = vmatpush1.msra.mxu0 0.0
    %435 = vmatprep.mubr.f32.mxu0 0.0
    %436 = vmatmul.mubr.f32.gmra.mrb[0].mxu0 %v369
    %v437 = vpop.f32.mrb[0].mxu0
    %v438 = vadd.f32 %v366, %v437
    %v439 = vpop.f32.mrb[0].mxu0
    %440 = vdwg.mxu0
    %v441 = vadd.f32 %v438, %v35
    %vm442 = vcmask 253952
    %v443 = vsel %vm442, %v441, 0.0
    %444 = vadd.xlane.f32.xlu0 %v443
    %v445 = vpop.xlane.xlu0 %444
    %v446 = vrcp.pop 32.0
    %v447 = vmul.f32 %v445, %v446
    %v448 = vsub.f32 %v441, %v447
    %v449 = vmul.f32 %v448, %v448
    %v450 = vsel %vm442, %v449, 0.0
    %451 = vadd.xlane.f32.xlu0 %v450
    %v452 = vpop.xlane.xlu0 %451
    %v453 = vmul.f32 %v452, %v446
    %v454 = vadd.f32 %v453, 1e-12
    %v455 = vrsqrt.pop %v454
    %v456 = vld [vmem:[%s3] sm:$0xff]
    %v457 = vld [vmem:[%s3 + $0x8] sm:$0xff]
    %v458 = vld [vmem:[%s3 + $0x10] sm:$0xff]
    %v459 = vld [vmem:[%s3 + $0x18] sm:$0xff]
    %v461 = vsel %vm41, %v441, 0
    %463 = vmatprep.subr.mxu0 0.0
    %464 = vmatpush1.msra.mxu0 %v456
    %465 = vmatprep.subr.mxu0 0.0
    %466 = vmatpush1.msra.mxu0 %v457
    %467 = vmatprep.subr.mxu0 0.0
    %468 = vmatpush1.msra.mxu0 %v458
    %469 = vmatprep.subr.mxu0 0.0
    %470 = vmatpush1.msra.mxu0 %v459
    %471 = vmatprep.subr.mxu0 0.0
    %472 = vmatpush1.msra.mxu0 0.0
    %473 = vmatprep.subr.mxu0 0.0
    %474 = vmatpush1.msra.mxu0 0.0
    %475 = vmatprep.subr.mxu0 0.0
    %476 = vmatpush1.msra.mxu0 0.0
    %477 = vmatprep.subr.mxu0 0.0
    %478 = vmatpush1.msra.mxu0 0.0
    %479 = vmatprep.subr.mxu0 0.0
    %480 = vmatpush1.msra.mxu0 0.0
    %481 = vmatprep.subr.mxu0 0.0
    %482 = vmatpush1.msra.mxu0 0.0
    %483 = vmatprep.subr.mxu0 0.0
    %484 = vmatpush1.msra.mxu0 0.0
    %485 = vmatprep.subr.mxu0 0.0
    %486 = vmatpush1.msra.mxu0 0.0
    %487 = vmatprep.subr.mxu0 0.0
    %488 = vmatpush1.msra.mxu0 0.0
    %489 = vmatprep.subr.mxu0 0.0
    %490 = vmatpush1.msra.mxu0 0.0
    %491 = vmatprep.subr.mxu0 0.0
    %492 = vmatpush1.msra.mxu0 0.0
    %493 = vmatprep.subr.mxu0 0.0
    %494 = vmatpush1.msra.mxu0 0.0
    %495 = vmatprep.subr.mxu0 0.0
    %496 = vmatpush1.msra.mxu0 0.0
    %497 = vmatprep.subr.mxu0 0.0
    %498 = vmatpush1.msra.mxu0 0.0
    %499 = vmatprep.subr.mxu0 0.0
    %500 = vmatpush1.msra.mxu0 0.0
    %501 = vmatprep.subr.mxu0 0.0
    %502 = vmatpush1.msra.mxu0 0.0
    %503 = vmatprep.subr.mxu0 0.0
    %504 = vmatpush1.msra.mxu0 0.0
    %505 = vmatprep.subr.mxu0 0.0
    %506 = vmatpush1.msra.mxu0 0.0
    %507 = vmatprep.subr.mxu0 0.0
    %508 = vmatpush1.msra.mxu0 0.0
    %509 = vmatprep.subr.mxu0 0.0
    %510 = vmatpush1.msra.mxu0 0.0
    %511 = vmatprep.subr.mxu0 0.0
    %512 = vmatpush1.msra.mxu0 0.0
    %513 = vmatprep.subr.mxu0 0.0
    %514 = vmatpush1.msra.mxu0 0.0
    %515 = vmatprep.subr.mxu0 0.0
    %516 = vmatpush1.msra.mxu0 0.0
    %517 = vmatprep.subr.mxu0 0.0
    %518 = vmatpush1.msra.mxu0 0.0
    %519 = vmatprep.subr.mxu0 0.0
    %520 = vmatpush1.msra.mxu0 0.0
    %521 = vmatprep.subr.mxu0 0.0
    %522 = vmatpush1.msra.mxu0 0.0
    %523 = vmatprep.subr.mxu0 0.0
    %524 = vmatpush1.msra.mxu0 0.0
    %525 = vmatprep.subr.mxu0 0.0
    %526 = vmatpush1.msra.mxu0 0.0
    %527 = vmatprep.mubr.f32.mxu0 0.0
    %528 = vmatmul.mubr.f32.gmra.mrb[0].mxu0 %v461
    %v529 = vpop.f32.mrb[0].mxu0
    %v530 = vadd.f32 0.0, %v529
    %v531 = vpop.f32.mrb[0].mxu0
    %532 = vdwg.mxu0
    %v533 = vlaneseq
    %v534 = vshrl.u32 %v533, 7
    %v535 = vsub.s32 1, %v534
    %v536 = vrot.slane %v36, %v535
    %v538 = vmul.f32 %v447, %v536
    %v539 = vsub.f32 %v530, %v538
    %v540 = vmul.f32 %v455, %v539
    %541 = vrot.lane.b32.xlu0 %v536, 120
    %v542 = vpop.permute.xlu0 %541
    %v544 = vadd.f32 %v540, %v542
    %vm545 = vcmask 57344
    %546 = vst.msk [vmem:[#allocation5] sm:$0x1] %vm545, %v544
    // Predicated region
    $region26: #{mhsaf_forward.1} parent=1 // pred_check
      _
    $region27: #{mhsaf_forward.1} parent=1 // pred_check_branch
      %548 = sbr.rel (0) target = $region29
    $region28: #{mhsaf_forward.1} parent=1 // pred_region
      %s550 = ssub.s32 16, 16
      %551 = vsyncadd [#allocation4], %s550
      %s553 = sshll.u32 [#allocation5], 4
      %s554 = int_to_ptr.vmem [resolvable:$true] %s553
      %556 = dma.vmem_to_hbm [thread:$0]  %s554, 16, %s5, [#allocation4]
    $region29: #{mhsaf_forward.1} parent=1 // pred_fallthru
      _
    // Predicated region
    $region30: #{mhsaf_forward.1} parent=1 // pred_check
      _
    $region31: #{mhsaf_forward.1} parent=1 // pred_check_branch
      %558 = sbr.rel (0) target = $region33
    $region32: #{mhsaf_forward.1} parent=1 // pred_region
      %559 = dma.done [#allocation4], 16
    $region33: #{mhsaf_forward.1} parent=1 // pred_fallthru
      _
    %560 = vsyncpa [#allocation3], 1
    %561 = vsyncpa [#allocation4], 1

</llo_original>
